<compile_context>
chip_gen: v7x
topology: tpu7x:2x2x1
jax: 0.10.0
libtpu: 0.0.40
codegen_flags: <defaults>
</compile_context>

<pallas_src>
import functools

import jax
import jax.numpy as jnp
from jax.experimental import pallas as pl
from jax.experimental.pallas import tpu as pltpu


def _grader_head_kernel(q_ref, r_ref, t_ref, w_ref, b_ref, o_ref, *,
                        inv_num_reports, apply_sigmoid):
    """combined = [q_cls, mean_R(report_cls), top_cls]; out = combined @ W + b."""
    q_cls = q_ref[...]                                        # (B, H)
    t_cls = t_ref[...]                                        # (B, H)
    # Mean over the report axis as sum * (1/R); 1/R is a compile-time constant.
    r_avg = jnp.sum(r_ref[...], axis=1) * inv_num_reports     # (B, H)

    # One fused MXU matmul over the concatenated (B, 3H) operand.
    combined = jnp.concatenate([q_cls, r_avg, t_cls], axis=-1)  # (B, 3H)
    out = jnp.dot(combined, w_ref[...],
                  preferred_element_type=jnp.float32)           # (B, OUT)
    out = out + b_ref[...]                                      # (1, OUT) bcast

    if apply_sigmoid:
        out = jax.nn.sigmoid(out)

    o_ref[...] = out.astype(o_ref.dtype)


def grader_forward(query_hidden, report_hidden, top_hidden, dense_w, dense_b,
                   dataset_name="college_physics"):
    """Pallas implementation of Grader.forward's grading head.

    query_hidden : (B, Sq, H)    — query_model last_hidden_state
    report_hidden: (B, R, Sr, H) — document_model last_hidden_state, viewed
                   back to 4D as the torch .view(batch, -1, S, H) does
    top_hidden   : (B, St, H)    — top-sentence last_hidden_state
    dense_w      : (3H, OUT)     — torch Linear weight, transposed (OUT=6 for
                   college_physics, else 1)
    dense_b      : (OUT,)
    """
    B, _, H = query_hidden.shape
    _, R, _, _ = report_hidden.shape
    out_dim = dense_w.shape[1]
    apply_sigmoid = dataset_name != "college_physics"

    # Slice the CLS rows OUTSIDE the kernel: only (B, H) / (B, R, H) vectors
    # ever get DMA'd to VMEM — the full (B, S, H) hidden states never move.
    q_cls = query_hidden[:, 0, :]          # (B, H)
    r_cls = report_hidden[:, :, 0, :]      # (B, R, H)
    t_cls = top_hidden[:, 0, :]            # (B, H)
    bias_2d = dense_b.reshape(1, out_dim)  # 2D for in-kernel broadcast

    kernel = functools.partial(
        _grader_head_kernel,
        inv_num_reports=1.0 / R,
        apply_sigmoid=apply_sigmoid)

    # Everything is tiny after CLS slicing: a single gridless invocation with
    # all operands fully resident in VMEM.
    out = pl.pallas_call(
        kernel,
        out_shape=jax.ShapeDtypeStruct((B, out_dim), jnp.float32),
        in_specs=[pl.BlockSpec(memory_space=pltpu.MemorySpace.VMEM)
                  for _ in range(5)],
        out_specs=pl.BlockSpec(memory_space=pltpu.MemorySpace.VMEM),
    )(q_cls, r_cls, t_cls, dense_w, bias_2d)

    if apply_sigmoid:
        return out.reshape(B)          # matches torch .view(batch_size)
    return out                         # (B, 6)


def _reference(query_hidden, report_hidden, top_hidden, dense_w, dense_b,
               dataset_name="college_physics"):
    """Plain-JAX reference mirroring the torch forward."""
    q_cls = query_hidden[:, 0, :]
    r_avg = report_hidden.mean(axis=1)[:, 0, :]
    t_cls = top_hidden[:, 0, :]
    combined = jnp.concatenate([q_cls, r_avg, t_cls], axis=1)
    out = combined @ dense_w + dense_b
    if dataset_name != "college_physics":
        return jax.nn.sigmoid(out).reshape(query_hidden.shape[0])
    return out


if __name__ == "__main__":
    # Small deterministic synthetic shapes (Electra-small has H=256; H=128
    # keeps the toy case small while staying lane-aligned):
    # batch=2, reports-per-example=3, seq=8, hidden=128.
    B, R, Sq, Sr, St, H = 2, 3, 8, 8, 8, 128

    key = jax.random.PRNGKey(0)
    kq, kr, kt, kw, kb, kw1, kb1 = jax.random.split(key, 7)

    # Stand-ins for encoder last_hidden_state outputs (see TODO(synk) above).
    query_hidden = jax.random.normal(kq, (B, Sq, H), dtype=jnp.float32)
    report_hidden = jax.random.normal(kr, (B, R, Sr, H), dtype=jnp.float32)
    top_hidden = jax.random.normal(kt, (B, St, H), dtype=jnp.float32)

    # --- college_physics path: Linear(3H, 6), no sigmoid ---
    OUT = 6
    dense_w = (jax.random.normal(kw, (3 * H, OUT), dtype=jnp.float32)
               * (1.0 / jnp.sqrt(3.0 * H)))
    dense_b = jax.random.normal(kb, (OUT,), dtype=jnp.float32) * 0.01

    out = grader_forward(query_hidden, report_hidden, top_hidden,
                         dense_w, dense_b, dataset_name="college_physics")
    out = jax.block_until_ready(out)
    ref = _reference(query_hidden, report_hidden, top_hidden, dense_w, dense_b,
                     dataset_name="college_physics")
    assert out.shape == (B, OUT), out.shape
    assert jnp.allclose(out, ref, atol=1e-4, rtol=1e-4), (out, ref)

    # --- other-dataset path: Linear(3H, 1) + sigmoid + view(B) ---
    dense_w1 = (jax.random.normal(kw1, (3 * H, 1), dtype=jnp.float32)
                * (1.0 / jnp.sqrt(3.0 * H)))
    dense_b1 = jax.random.normal(kb1, (1,), dtype=jnp.float32) * 0.01

    out1 = grader_forward(query_hidden, report_hidden, top_hidden,
                          dense_w1, dense_b1, dataset_name="other")
    out1 = jax.block_until_ready(out1)
    ref1 = _reference(query_hidden, report_hidden, top_hidden,
                      dense_w1, dense_b1, dataset_name="other")
    assert out1.shape == (B,), out1.shape
    assert jnp.allclose(out1, ref1, atol=1e-4, rtol=1e-4), (out1, ref1)

    print("KERNEL_OK")
</pallas_src>

<mosaic_0001>
module attributes {stable_mosaic.version = 11 : i64} {
  func.func @_grader_head_kernel(%arg0: memref<2x128xf32, #tpu.memory_space<vmem>>, %arg1: memref<2x3x128xf32, #tpu.memory_space<vmem>>, %arg2: memref<2x128xf32, #tpu.memory_space<vmem>>, %arg3: memref<384x6xf32, #tpu.memory_space<vmem>>, %arg4: memref<1x6xf32, #tpu.memory_space<vmem>>, %arg5: memref<2x6xf32, #tpu.memory_space<vmem>>) attributes {dimension_semantics = [], scalar_prefetch = 0 : i64, scratch_operands = 0 : i64, tpu.core_type = #tpu.core_type<tc>} {
    %c0 = arith.constant 0 : index
    %c0_0 = arith.constant 0 : index
    %0 = vector.load %arg0[%c0, %c0_0] : memref<2x128xf32, #tpu.memory_space<vmem>>, vector<2x128xf32>
    %c0_1 = arith.constant 0 : index
    %c0_2 = arith.constant 0 : index
    %1 = vector.load %arg2[%c0_1, %c0_2] : memref<2x128xf32, #tpu.memory_space<vmem>>, vector<2x128xf32>
    %c0_3 = arith.constant 0 : index
    %c0_4 = arith.constant 0 : index
    %c0_5 = arith.constant 0 : index
    %2 = vector.load %arg1[%c0_3, %c0_4, %c0_5] : memref<2x3x128xf32, #tpu.memory_space<vmem>>, vector<2x3x128xf32>
    %cst = arith.constant dense<0.000000e+00> : vector<2x128xf32>
    %3 = vector.multi_reduction <add>, %2, %cst [1] : vector<2x3x128xf32> to vector<2x128xf32>
    %cst_6 = arith.constant 0.333333343 : f32
    %4 = vector.broadcast %cst_6 : f32 to vector<2x128xf32>
    %5 = arith.mulf %3, %4 : vector<2x128xf32>
    %6 = tpu.concatenate %0, %5, %1 in 1 : vector<2x128xf32>, vector<2x128xf32>, vector<2x128xf32> -> vector<2x384xf32>
    %c0_7 = arith.constant 0 : index
    %c0_8 = arith.constant 0 : index
    %7 = vector.load %arg3[%c0_7, %c0_8] : memref<384x6xf32, #tpu.memory_space<vmem>>, vector<384x6xf32>
    %cst_9 = arith.constant dense<0.000000e+00> : vector<2x6xf32>
    %8 = tpu.matmul %6, %7, %cst_9 {dimension_numbers = #tpu.dot_dimension_numbers<[1], [0], [0], [1], [0, 0, 1, 1], [], []>} : vector<2x384xf32>, vector<384x6xf32>, vector<2x6xf32> -> vector<2x6xf32>
    %c0_10 = arith.constant 0 : index
    %c0_11 = arith.constant 0 : index
    %9 = vector.load %arg4[%c0_10, %c0_11] : memref<1x6xf32, #tpu.memory_space<vmem>>, vector<1x6xf32>
    %10 = vector.broadcast %9 : vector<1x6xf32> to vector<2x6xf32>
    %11 = arith.addf %8, %10 : vector<2x6xf32>
    %c0_12 = arith.constant 0 : index
    %c0_13 = arith.constant 0 : index
    %12 = vector.load %arg5[%c0_12, %c0_13] : memref<2x6xf32, #tpu.memory_space<vmem>>, vector<2x6xf32>
    tpu.vector_store %arg5[%c0_12, %c0_13], %11 {strides = array<i32>} : memref<2x6xf32, #tpu.memory_space<vmem>>, vector<2x6xf32>,
    return
  }
}

</mosaic_0001>

<llo_original>
// kernel: tpu_custom_call.1
$region0: #{tpu_custom_call.1}
  #allocation0 [shape = 'u32[]', space=smem, size = 0x4, offset = 0x4, fixed_abs, tag = 'smem constant byte address 0x4 - core index']
  #allocation1 [shape = 'u32[144,128]{1,0:T(1,128)}', space=vmem, size = 0x12000, scoped, tag = 'internal scratch']
  %s0 = inlined_call_operand.vmem [shape: f32[2,128], index: 0, kind: input, shape index: {}]
  %s1 = inlined_call_operand.vmem [shape: f32[2,3,128], index: 1, kind: input, shape index: {}]
  %s2 = inlined_call_operand.vmem [shape: f32[2,128], index: 2, kind: input, shape index: {}]
  %s3 = inlined_call_operand.vmem [shape: f32[384,6], index: 3, kind: input, shape index: {}]
  %s4 = inlined_call_operand.vmem [shape: f32[1,6], index: 4, kind: input, shape index: {}]
  %s5 = inlined_call_operand.hbm [shape: f32[2,6], index: 5, kind: output, shape index: {}]
  %s6 = sld [smem:[#allocation0]]
  $region30: #{tpu_custom_call.1} parent=0
    _
  %s8 = ssub.s32 1, %s6
  %s9 = scalar_select 0, %s8, %s6
  $region1: #{tpu_custom_call.1} parent=0
    #allocation2 [shape = 'u8[1024]{0}', space=vmem, size = 0x400, scoped, tag = 'output window, operand 0, single buffered']
    #allocation3 [shape = 's32[1]{0}', space=sflag, size = 0x4, scoped, tag = 'scoped memory for tpu_custom_call.1']
    %10 = vsyncpa [#allocation3], 0
    // Predicated region
    $region2: #{tpu_custom_call.1} parent=1 // pred_check
      _
    $region3: #{tpu_custom_call.1} parent=1 // pred_check_branch
      %12 = sbr.rel (0) target = $region5
    $region4: #{tpu_custom_call.1} parent=1 // pred_region
      _
    $region5: #{tpu_custom_call.1} parent=1 // pred_fallthru
      _
    // Predicated region
    $region6: #{tpu_custom_call.1} parent=1 // pred_check
      _
    $region7: #{tpu_custom_call.1} parent=1 // pred_check_branch
      %14 = sbr.rel (0) target = $region9
    $region8: #{tpu_custom_call.1} parent=1 // pred_region
      _
    $region9: #{tpu_custom_call.1} parent=1 // pred_fallthru
      _
    // Predicated region
    $region10: #{tpu_custom_call.1} parent=1 // pred_check
      _
    $region11: #{tpu_custom_call.1} parent=1 // pred_check_branch
      %16 = sbr.rel (0) target = $region13
    $region12: #{tpu_custom_call.1} parent=1 // pred_region
      _
    $region13: #{tpu_custom_call.1} parent=1 // pred_fallthru
      _
    // Predicated region
    $region14: #{tpu_custom_call.1} parent=1 // pred_check
      _
    $region15: #{tpu_custom_call.1} parent=1 // pred_check_branch
      %18 = sbr.rel (0) target = $region17
    $region16: #{tpu_custom_call.1} parent=1 // pred_region
      _
    $region17: #{tpu_custom_call.1} parent=1 // pred_fallthru
      _
    // Predicated region
    $region18: #{tpu_custom_call.1} parent=1 // pred_check
      _
    $region19: #{tpu_custom_call.1} parent=1 // pred_check_branch
      %20 = sbr.rel (0) target = $region21
    $region20: #{tpu_custom_call.1} parent=1 // pred_region
      _
    $region21: #{tpu_custom_call.1} parent=1 // pred_fallthru
      _
    %v21 = vld [vmem:[%s0] sm:$0x3]
    %v22 = vld [vmem:[%s2] sm:$0x3]
    %v23 = vld [vmem:[%s1] sm:$0x7]
    %v24 = vld [vmem:[%s1 + $0x4] sm:$0x7]
    %vm25 = vcmask 1042432
    %v26 = vsel %vm25, %v23, 0.0
    %v27 = vrot.slane %v26, 4
    %v28 = vadd.f32 %v26, %v27
    %v29 = vrot.slane %v28, 2
    %v30 = vadd.f32 %v28, %v29
    %v31 = vrot.slane %v30, 1
    %v32 = vadd.f32 %v30, %v31
    %v33 = vsel %vm25, %v24, 0.0
    %v34 = vrot.slane %v33, 4
    %v35 = vadd.f32 %v33, %v34
    %v36 = vrot.slane %v35, 2
    %v37 = vadd.f32 %v35, %v36
    %v38 = vrot.slane %v37, 1
    %v39 = vadd.f32 %v37, %v38
    %v40 = vmul.f32 %v32, 0.33333334
    %v41 = vmul.f32 %v39, 0.33333334
    %vm44 = vcmask 1041409
    %v45 = vsel %vm44, %v41, %v40
    %v47 = vld [vmem:[%s3] sm:$0xff]
    %v48 = vld [vmem:[%s3 + $0x8] sm:$0xff]
    %v49 = vld [vmem:[%s3 + $0x10] sm:$0xff]
    %v50 = vld [vmem:[%s3 + $0x18] sm:$0xff]
    %v51 = vld [vmem:[%s3 + $0x20] sm:$0xff]
    %v52 = vld [vmem:[%s3 + $0x28] sm:$0xff]
    %v53 = vld [vmem:[%s3 + $0x30] sm:$0xff]
    %v54 = vld [vmem:[%s3 + $0x38] sm:$0xff]
    %v55 = vld [vmem:[%s3 + $0x40] sm:$0xff]
    %v56 = vld [vmem:[%s3 + $0x48] sm:$0xff]
    %v57 = vld [vmem:[%s3 + $0x50] sm:$0xff]
    %v58 = vld [vmem:[%s3 + $0x58] sm:$0xff]
    %v59 = vld [vmem:[%s3 + $0x60] sm:$0xff]
    %v60 = vld [vmem:[%s3 + $0x68] sm:$0xff]
    %v61 = vld [vmem:[%s3 + $0x70] sm:$0xff]
    %v62 = vld [vmem:[%s3 + $0x78] sm:$0xff]
    %v63 = vld [vmem:[%s3 + $0x80] sm:$0xff]
    %v64 = vld [vmem:[%s3 + $0x88] sm:$0xff]
    %v65 = vld [vmem:[%s3 + $0x90] sm:$0xff]
    %v66 = vld [vmem:[%s3 + $0x98] sm:$0xff]
    %v67 = vld [vmem:[%s3 + $0xa0] sm:$0xff]
    %v68 = vld [vmem:[%s3 + $0xa8] sm:$0xff]
    %v69 = vld [vmem:[%s3 + $0xb0] sm:$0xff]
    %v70 = vld [vmem:[%s3 + $0xb8] sm:$0xff]
    %v71 = vld [vmem:[%s3 + $0xc0] sm:$0xff]
    %v72 = vld [vmem:[%s3 + $0xc8] sm:$0xff]
    %v73 = vld [vmem:[%s3 + $0xd0] sm:$0xff]
    %v74 = vld [vmem:[%s3 + $0xd8] sm:$0xff]
    %v75 = vld [vmem:[%s3 + $0xe0] sm:$0xff]
    %v76 = vld [vmem:[%s3 + $0xe8] sm:$0xff]
    %v77 = vld [vmem:[%s3 + $0xf0] sm:$0xff]
    %v78 = vld [vmem:[%s3 + $0xf8] sm:$0xff]
    %v79 = vld [vmem:[%s3 + $0x100] sm:$0xff]
    %v80 = vld [vmem:[%s3 + $0x108] sm:$0xff]
    %v81 = vld [vmem:[%s3 + $0x110] sm:$0xff]
    %v82 = vld [vmem:[%s3 + $0x118] sm:$0xff]
    %v83 = vld [vmem:[%s3 + $0x120] sm:$0xff]
    %v84 = vld [vmem:[%s3 + $0x128] sm:$0xff]
    %v85 = vld [vmem:[%s3 + $0x130] sm:$0xff]
    %v86 = vld [vmem:[%s3 + $0x138] sm:$0xff]
    %v87 = vld [vmem:[%s3 + $0x140] sm:$0xff]
    %v88 = vld [vmem:[%s3 + $0x148] sm:$0xff]
    %v89 = vld [vmem:[%s3 + $0x150] sm:$0xff]
    %v90 = vld [vmem:[%s3 + $0x158] sm:$0xff]
    %v91 = vld [vmem:[%s3 + $0x160] sm:$0xff]
    %v92 = vld [vmem:[%s3 + $0x168] sm:$0xff]
    %v93 = vld [vmem:[%s3 + $0x170] sm:$0xff]
    %v94 = vld [vmem:[%s3 + $0x178] sm:$0xff]
    %v95 = vld [vmem:[%s4] sm:$0x1]
    %v97 = vlaneseq
    %v98 = vshrl.u32 %v97, 7
    %v99 = vsub.s32 0, %v98
    %v100 = vrot.slane %v95, %v99
    %102 = vmatprep.subr.mxu0 0.0
    %103 = vmatpush1.msra.mxu0 %v47
    %104 = vmatprep.subr.mxu0 0.0
    %105 = vmatpush1.msra.mxu0 %v48
    %106 = vmatprep.subr.mxu0 0.0
    %107 = vmatpush1.msra.mxu0 %v49
    %108 = vmatprep.subr.mxu0 0.0
    %109 = vmatpush1.msra.mxu0 %v50
    %110 = vmatprep.subr.mxu0 0.0
    %111 = vmatpush1.msra.mxu0 %v51
    %112 = vmatprep.subr.mxu0 0.0
    %113 = vmatpush1.msra.mxu0 %v52
    %114 = vmatprep.subr.mxu0 0.0
    %115 = vmatpush1.msra.mxu0 %v53
    %116 = vmatprep.subr.mxu0 0.0
    %117 = vmatpush1.msra.mxu0 %v54
    %118 = vmatprep.subr.mxu0 0.0
    %119 = vmatpush1.msra.mxu0 %v55
    %120 = vmatprep.subr.mxu0 0.0
    %121 = vmatpush1.msra.mxu0 %v56
    %122 = vmatprep.subr.mxu0 0.0
    %123 = vmatpush1.msra.mxu0 %v57
    %124 = vmatprep.subr.mxu0 0.0
    %125 = vmatpush1.msra.mxu0 %v58
    %126 = vmatprep.subr.mxu0 0.0
    %127 = vmatpush1.msra.mxu0 %v59
    %128 = vmatprep.subr.mxu0 0.0
    %129 = vmatpush1.msra.mxu0 %v60
    %130 = vmatprep.subr.mxu0 0.0
    %131 = vmatpush1.msra.mxu0 %v61
    %132 = vmatprep.subr.mxu0 0.0
    %133 = vmatpush1.msra.mxu0 %v62
    %134 = vmatprep.subr.mxu0 0.0
    %135 = vmatpush1.msra.mxu0 %v63
    %136 = vmatprep.subr.mxu0 0.0
    %137 = vmatpush1.msra.mxu0 %v64
    %138 = vmatprep.subr.mxu0 0.0
    %139 = vmatpush1.msra.mxu0 %v65
    %140 = vmatprep.subr.mxu0 0.0
    %141 = vmatpush1.msra.mxu0 %v66
    %142 = vmatprep.subr.mxu0 0.0
    %143 = vmatpush1.msra.mxu0 %v67
    %144 = vmatprep.subr.mxu0 0.0
    %145 = vmatpush1.msra.mxu0 %v68
    %146 = vmatprep.subr.mxu0 0.0
    %147 = vmatpush1.msra.mxu0 %v69
    %148 = vmatprep.subr.mxu0 0.0
    %149 = vmatpush1.msra.mxu0 %v70
    %150 = vmatprep.subr.mxu0 0.0
    %151 = vmatpush1.msra.mxu0 %v71
    %152 = vmatprep.subr.mxu0 0.0
    %153 = vmatpush1.msra.mxu0 %v72
    %154 = vmatprep.subr.mxu0 0.0
    %155 = vmatpush1.msra.mxu0 %v73
    %156 = vmatprep.subr.mxu0 0.0
    %157 = vmatpush1.msra.mxu0 %v74
    %158 = vmatprep.subr.mxu0 0.0
    %159 = vmatpush1.msra.mxu0 %v75
    %160 = vmatprep.subr.mxu0 0.0
    %161 = vmatpush1.msra.mxu0 %v76
    %162 = vmatprep.subr.mxu0 0.0
    %163 = vmatpush1.msra.mxu0 %v77
    %164 = vmatprep.subr.mxu0 0.0
    %165 = vmatpush1.msra.mxu0 %v78
    %166 = vmatprep.mubr.f32.mxu0 %v45
    %167 = vmatmul.mubr.f32.gmra.mrb[0].mxu0 %v21
    %v168 = vpop.f32.mrb[0].mxu0
    %v169 = vadd.f32 %v100, %v168
    %v170 = vpop.f32.mrb[0].mxu0
    %171 = vdwg.mxu0
    %172 = vmatprep.subr.mxu0 0.0
    %173 = vmatpush1.msra.mxu0 %v79
    %174 = vmatprep.subr.mxu0 0.0
    %175 = vmatpush1.msra.mxu0 %v80
    %176 = vmatprep.subr.mxu0 0.0
    %177 = vmatpush1.msra.mxu0 %v81
    %178 = vmatprep.subr.mxu0 0.0
    %179 = vmatpush1.msra.mxu0 %v82
    %180 = vmatprep.subr.mxu0 0.0
    %181 = vmatpush1.msra.mxu0 %v83
    %182 = vmatprep.subr.mxu0 0.0
    %183 = vmatpush1.msra.mxu0 %v84
    %184 = vmatprep.subr.mxu0 0.0
    %185 = vmatpush1.msra.mxu0 %v85
    %186 = vmatprep.subr.mxu0 0.0
    %187 = vmatpush1.msra.mxu0 %v86
    %188 = vmatprep.subr.mxu0 0.0
    %189 = vmatpush1.msra.mxu0 %v87
    %190 = vmatprep.subr.mxu0 0.0
    %191 = vmatpush1.msra.mxu0 %v88
    %192 = vmatprep.subr.mxu0 0.0
    %193 = vmatpush1.msra.mxu0 %v89
    %194 = vmatprep.subr.mxu0 0.0
    %195 = vmatpush1.msra.mxu0 %v90
    %196 = vmatprep.subr.mxu0 0.0
    %197 = vmatpush1.msra.mxu0 %v91
    %198 = vmatprep.subr.mxu0 0.0
    %199 = vmatpush1.msra.mxu0 %v92
    %200 = vmatprep.subr.mxu0 0.0
    %201 = vmatpush1.msra.mxu0 %v93
    %202 = vmatprep.subr.mxu0 0.0
    %203 = vmatpush1.msra.mxu0 %v94
    %204 = vmatprep.subr.mxu0 0.0
    %205 = vmatpush1.msra.mxu0 0.0
    %206 = vmatprep.subr.mxu0 0.0
    %207 = vmatpush1.msra.mxu0 0.0
    %208 = vmatprep.subr.mxu0 0.0
    %209 = vmatpush1.msra.mxu0 0.0
    %210 = vmatprep.subr.mxu0 0.0
    %211 = vmatpush1.msra.mxu0 0.0
    %212 = vmatprep.subr.mxu0 0.0
    %213 = vmatpush1.msra.mxu0 0.0
    %214 = vmatprep.subr.mxu0 0.0
    %215 = vmatpush1.msra.mxu0 0.0
    %216 = vmatprep.subr.mxu0 0.0
    %217 = vmatpush1.msra.mxu0 0.0
    %218 = vmatprep.subr.mxu0 0.0
    %219 = vmatpush1.msra.mxu0 0.0
    %220 = vmatprep.subr.mxu0 0.0
    %221 = vmatpush1.msra.mxu0 0.0
    %222 = vmatprep.subr.mxu0 0.0
    %223 = vmatpush1.msra.mxu0 0.0
    %224 = vmatprep.subr.mxu0 0.0
    %225 = vmatpush1.msra.mxu0 0.0
    %226 = vmatprep.subr.mxu0 0.0
    %227 = vmatpush1.msra.mxu0 0.0
    %228 = vmatprep.subr.mxu0 0.0
    %229 = vmatpush1.msra.mxu0 0.0
    %230 = vmatprep.subr.mxu0 0.0
    %231 = vmatpush1.msra.mxu0 0.0
    %232 = vmatprep.subr.mxu0 0.0
    %233 = vmatpush1.msra.mxu0 0.0
    %234 = vmatprep.subr.mxu0 0.0
    %235 = vmatpush1.msra.mxu0 0.0
    %236 = vmatprep.mubr.f32.mxu0 0.0
    %237 = vmatmul.mubr.f32.gmra.mrb[0].mxu0 %v22
    %v238 = vpop.f32.mrb[0].mxu0
    %v239 = vadd.f32 %v169, %v238
    %v240 = vpop.f32.mrb[0].mxu0
    %241 = vdwg.mxu0
    %vm242 = vcmask 41984
    %243 = vst.msk [vmem:[#allocation2] sm:$0x3] %vm242, %v239
    // Predicated region
    $region22: #{tpu_custom_call.1} parent=1 // pred_check
      _
    $region23: #{tpu_custom_call.1} parent=1 // pred_check_branch
      %245 = sbr.rel (0) target = $region25
    $region24: #{tpu_custom_call.1} parent=1 // pred_region
      %s247 = ssub.s32 32, 32
      %248 = vsyncadd [#allocation3], %s247
      %s250 = sshll.u32 [#allocation2], 4
      %s251 = int_to_ptr.vmem [resolvable:$true] %s250
      %253 = dma.vmem_to_hbm [thread:$0]  %s251, 32, %s5, [#allocation3]
    $region25: #{tpu_custom_call.1} parent=1 // pred_fallthru
      _
    // Predicated region
    $region26: #{tpu_custom_call.1} parent=1 // pred_check
      _
    $region27: #{tpu_custom_call.1} parent=1 // pred_check_branch
      %255 = sbr.rel (0) target = $region29
    $region28: #{tpu_custom_call.1} parent=1 // pred_region
      %256 = dma.done [#allocation3], 32
    $region29: #{tpu_custom_call.1} parent=1 // pred_fallthru
      _
    %257 = vsyncpa [#allocation3], 1

</llo_original>
